<compile_context>
chip_gen: v6e
topology: v6e:2x2x1
jax: 0.10.0
libtpu: 0.0.40
codegen_flags: <defaults>
</compile_context>

<pallas_src>
import jax
import jax.numpy as jnp
from jax import lax
from jax.experimental import pallas as pl
from jax.experimental.pallas import tpu as pltpu


def _round_up(x: int, m: int) -> int:
    return ((x + m - 1) // m) * m


def dynamics_kernel(t_ref, z_ref, w_ref, b_ref, o_ref):
    # t: (1,) f32 scalar in SMEM
    # z: (TB, Dp_in) f32 batch tile (streamed over the grid)
    # w: (Dp_in, Dp_out) f32 -- ALREADY W^T (padded) from the wrapper, so this
    #    is a canonical (TB,K)@(K,N) MXU matmul with no in-kernel transpose.
    # b: (1, Dp_out) f32, VMEM-resident across grid steps
    y = lax.dot_general(
        z_ref[...], w_ref[...],
        dimension_numbers=(((1,), (0,)), ((), ())),
        preferred_element_type=jnp.float32,
    )
    y = y + b_ref[...]                       # broadcast (1, Dp_out) over rows
    o_ref[...] = jnp.tanh(y) * t_ref[0]      # EUP tanh + VPU scale, hidden under matmul


def prepare_dynamics_params(weight, bias):
    """One-time pad + transpose of the Linear parameters.

    `weight` is PyTorch (out, in) layout. Returns a lane-dense W^T slab and a
    padded bias row. Do this ONCE per parameter set (not per dynamics call).
    """
    d_out, d_in = weight.shape
    dp_in, dp_out = _round_up(d_in, 128), _round_up(d_out, 128)
    w_p = jnp.zeros((dp_in, dp_out), jnp.float32)
    w_p = w_p.at[:d_in, :d_out].set(jnp.asarray(weight, jnp.float32).T)
    b_p = jnp.zeros((1, dp_out), jnp.float32)
    b_p = b_p.at[0, :d_out].set(jnp.asarray(bias, jnp.float32))
    return w_p, b_p


def dynamics_forward(z, w_p, b_p, t, *, block_b=2048,
                     vmem_limit_bytes=32 * 1024 * 1024):
    """z: (B, D) f32, (w_p, b_p) from prepare_dynamics_params, t: scalar."""
    B, D = z.shape
    dp_in, dp_out = w_p.shape

    # --- batch tile size -------------------------------------------------
    # Mem-bound kernel: size TB so double-buffered z+out stays under ~16 MiB,
    # but keep >=2 grid steps when the batch allows (v7x megacore).
    bytes_per_row = (dp_in + dp_out) * 4 * 2            # z + out, double-buffered
    tb_cap = max(8, ((16 << 20) // bytes_per_row) // 8 * 8)
    b8 = _round_up(B, 8)
    tb = min(block_b, tb_cap, b8)
    if b8 > 8 and b8 // tb < 2:
        tb = max(8, _round_up(pl.cdiv(b8, 2), 8))
    bp = _round_up(B, tb)

    # --- pad z only when needed (pads/slices are extra HBM passes) --------
    if bp != B or dp_in != D:
        z_in = jnp.zeros((bp, dp_in), jnp.float32).at[:B, :D].set(
            z.astype(jnp.float32))
    else:
        z_in = z.astype(jnp.float32)

    t_in = jnp.asarray(t, jnp.float32).reshape(1)

    out_p = pl.pallas_call(
        dynamics_kernel,
        out_shape=jax.ShapeDtypeStruct((bp, dp_out), jnp.float32),
        grid=(bp // tb,),
        in_specs=[
            pl.BlockSpec(memory_space=pltpu.SMEM),           # t: scalar in SMEM
            pl.BlockSpec((tb, dp_in), lambda i: (i, 0)),     # z: streamed tiles
            pl.BlockSpec((dp_in, dp_out), lambda i: (0, 0)), # W^T: VMEM-resident
            pl.BlockSpec((1, dp_out), lambda i: (0, 0)),     # bias: VMEM-resident
        ],
        out_specs=pl.BlockSpec((tb, dp_out), lambda i: (i, 0)),
        compiler_params=pltpu.CompilerParams(
            dimension_semantics=("parallel",),               # megacore-shardable
            vmem_limit_bytes=vmem_limit_bytes,               # covers v5e 16 MiB default
        ),
    )(t_in, z_in, w_p, b_p)

    if bp != B or dp_out != D:
        return out_p[:B, :D]
    return out_p


dynamics_forward_jit = jax.jit(
    dynamics_forward, static_argnames=("block_b", "vmem_limit_bytes"))


if __name__ == "__main__":
    B, D = 8, 32  # batch, n_dim

    key = jax.random.PRNGKey(0)
    k_z, k_w, k_b = jax.random.split(key, 3)

    # Same init distribution as torch.nn.Linear default: U(-1/sqrt(n), 1/sqrt(n)).
    bound = 1.0 / jnp.sqrt(jnp.float32(D))
    weight = jax.random.uniform(k_w, (D, D), jnp.float32, -bound, bound)  # (out, in)
    bias = jax.random.uniform(k_b, (D,), jnp.float32, -bound, bound)

    z = jax.random.normal(k_z, (B, D), jnp.float32)
    t = jnp.float32(0.5)

    # One-time parameter prep (reused across every dynamics evaluation).
    w_p, b_p = prepare_dynamics_params(weight, bias)

    out = jax.block_until_ready(dynamics_forward_jit(z, w_p, b_p, t))

    # Reference (mirrors torch.tanh(linear(z)) * t).
    ref = jnp.tanh(z @ weight.T + bias) * t
    assert out.shape == (B, D)
    assert jnp.allclose(out, ref, atol=1e-5, rtol=1e-5)

    print("KERNEL_OK")
</pallas_src>

<mosaic_0001>
module attributes {stable_mosaic.version = 11 : i64} {
  func.func @dynamics_kernel(%arg0: i32, %arg1: memref<1xf32, #tpu.memory_space<smem>>, %arg2: memref<8x128xf32, #tpu.memory_space<vmem>>, %arg3: memref<128x128xf32, #tpu.memory_space<vmem>>, %arg4: memref<1x128xf32, #tpu.memory_space<vmem>>, %arg5: memref<8x128xf32, #tpu.memory_space<vmem>>) attributes {dimension_semantics = [#tpu.dimension_semantics<parallel>], iteration_bounds = array<i64: 1>, scalar_prefetch = 0 : i64, scratch_operands = 0 : i64, tpu.core_type = #tpu.core_type<tc>, window_params = [{transform_indices = @transform_0, window_bounds = array<i64: 1>}, {transform_indices = @transform_1, window_bounds = array<i64: 8, 128>}, {pipeline_mode = #tpu.pipeline_mode<synchronous>, transform_indices = @transform_2, window_bounds = array<i64: 128, 128>}, {pipeline_mode = #tpu.pipeline_mode<synchronous>, transform_indices = @transform_3, window_bounds = array<i64: 1, 128>}, {transform_indices = @transform_4, window_bounds = array<i64: 8, 128>}]} {
    %c0 = arith.constant 0 : index
    %c0_0 = arith.constant 0 : index
    %0 = vector.load %arg2[%c0, %c0_0] : memref<8x128xf32, #tpu.memory_space<vmem>>, vector<8x128xf32>
    %c0_1 = arith.constant 0 : index
    %c0_2 = arith.constant 0 : index
    %1 = vector.load %arg3[%c0_1, %c0_2] : memref<128x128xf32, #tpu.memory_space<vmem>>, vector<128x128xf32>
    %cst = arith.constant dense<0.000000e+00> : vector<8x128xf32>
    %2 = tpu.matmul %0, %1, %cst {dimension_numbers = #tpu.dot_dimension_numbers<[1], [0], [0], [1], [0, 0, 1, 1], [], []>} : vector<8x128xf32>, vector<128x128xf32>, vector<8x128xf32> -> vector<8x128xf32>
    %c0_3 = arith.constant 0 : index
    %c0_4 = arith.constant 0 : index
    %3 = vector.load %arg4[%c0_3, %c0_4] : memref<1x128xf32, #tpu.memory_space<vmem>>, vector<1x128xf32>
    %4 = vector.broadcast %3 : vector<1x128xf32> to vector<8x128xf32>
    %5 = arith.addf %2, %4 : vector<8x128xf32>
    %6 = math.tanh %5 : vector<8x128xf32>
    %c0_5 = arith.constant 0 : index
    %7 = memref.load %arg1[%c0_5] : memref<1xf32, #tpu.memory_space<smem>>
    %8 = vector.broadcast %7 : f32 to vector<8x128xf32>
    %9 = arith.mulf %6, %8 : vector<8x128xf32>
    %c0_6 = arith.constant 0 : index
    %c0_7 = arith.constant 0 : index
    %10 = vector.load %arg5[%c0_6, %c0_7] : memref<8x128xf32, #tpu.memory_space<vmem>>, vector<8x128xf32>
    tpu.vector_store %arg5[%c0_6, %c0_7], %9 {strides = array<i32>} : memref<8x128xf32, #tpu.memory_space<vmem>>, vector<8x128xf32>,
    return
  }
  func.func @transform_0(%arg0: i32) -> i32 {
    %c0_i32 = arith.constant 0 : i32
    %c0_i32_0 = arith.constant 0 : i32
    return %c0_i32 : i32
  }
  func.func @transform_1(%arg0: i32) -> (i32, i32) {
    %c0_i32 = arith.constant 0 : i32
    %c0_i32_0 = arith.constant 0 : i32
    return %arg0, %c0_i32 : i32, i32
  }
  func.func @transform_2(%arg0: i32) -> (i32, i32) {
    %c0_i32 = arith.constant 0 : i32
    %c0_i32_0 = arith.constant 0 : i32
    %c0_i32_1 = arith.constant 0 : i32
    return %c0_i32, %c0_i32_0 : i32, i32
  }
  func.func @transform_3(%arg0: i32) -> (i32, i32) {
    %c0_i32 = arith.constant 0 : i32
    %c0_i32_0 = arith.constant 0 : i32
    %c0_i32_1 = arith.constant 0 : i32
    return %c0_i32, %c0_i32_0 : i32, i32
  }
  func.func @transform_4(%arg0: i32) -> (i32, i32) {
    %c0_i32 = arith.constant 0 : i32
    %c0_i32_0 = arith.constant 0 : i32
    return %arg0, %c0_i32 : i32, i32
  }
}

</mosaic_0001>

<llo_original>
// kernel: dynamics_forward.1
$region0: #{dynamics_forward.1}
  #allocation0 [shape = 'u32[]', space=smem, size = 0x4, offset = 0x4, fixed_abs, tag = 'smem constant byte address 0x4 - core index']
  #allocation1 [shape = 'u32[144,128]{1,0:T(1,128)}', space=vmem, size = 0x12000, scoped, tag = 'internal scratch']
  #allocation2 [shape = 'f32[1]{0:T(128)S(6)}', space=smem, size = 0x200, scoped, tag = 'scoped memory for dynamics_forward.1']
  %s0 = inlined_call_operand.<no memory space> [shape: f32[1], index: 0, kind: input, shape index: {}]
  %s1 = inlined_call_operand.vmem [shape: f32[8,128], index: 1, kind: input, shape index: {}]
  %s2 = inlined_call_operand.hbm [shape: f32[128,128], index: 2, kind: input, shape index: {}]
  %s3 = inlined_call_operand.vmem [shape: f32[1,128], index: 3, kind: input, shape index: {}]
  %s4 = inlined_call_operand.hbm [shape: f32[8,128], index: 4, kind: output, shape index: {}]
  %s5 = sld [smem:[#allocation0]]
  $region30: #{dynamics_forward.1} parent=0
    _
  %s7 = ssub.s32 1, %s5
  %s8 = scalar_select 0, %s7, %s5
  %9 = sst [smem:[#allocation2]] %s0
  $region1: #{dynamics_forward.1} parent=0
    #allocation3 [shape = 'u8[65536]{0}', space=vmem, size = 0x10000, scoped, tag = 'input window, operand 2, single buffered']
    #allocation4 [shape = 's32[1]{0}', space=sflag, size = 0x4, scoped, tag = 'scoped memory for dynamics_forward.1']
    #allocation5 [shape = 's32[1]{0}', space=sflag, size = 0x4, scoped, tag = 'scoped memory for dynamics_forward.1']
    #allocation6 [shape = 'u8[4096]{0}', space=vmem, size = 0x1000, scoped, tag = 'output window, operand 0, single buffered']
    %10 = vsyncpa [#allocation4], 0
    %11 = vsyncpa [#allocation5], 0
    // Predicated region
    $region2: #{dynamics_forward.1} parent=1 // pred_check
      _
    $region3: #{dynamics_forward.1} parent=1 // pred_check_branch
      %13 = sbr.rel (0) target = $region5
    $region4: #{dynamics_forward.1} parent=1 // pred_region
      _
    $region5: #{dynamics_forward.1} parent=1 // pred_fallthru
      _
    // Predicated region
    $region6: #{dynamics_forward.1} parent=1 // pred_check
      _
    $region7: #{dynamics_forward.1} parent=1 // pred_check_branch
      %15 = sbr.rel (0) target = $region9
    $region8: #{dynamics_forward.1} parent=1 // pred_region
      _
    $region9: #{dynamics_forward.1} parent=1 // pred_fallthru
      _
    // Predicated region
    $region10: #{dynamics_forward.1} parent=1 // pred_check
      _
    $region11: #{dynamics_forward.1} parent=1 // pred_check_branch
      %17 = sbr.rel (0) target = $region13
    $region12: #{dynamics_forward.1} parent=1 // pred_region
      %s19 = ssub.s32 2048, 2048
      %20 = vsyncadd [#allocation4], %s19
      %s21 = sshll.u32 [#allocation3], 4
      %s22 = int_to_ptr.vmem [resolvable:$true] %s21
      %27 = dma.hbm_to_vmem [thread:$0]  %s2, 2048, %s22, [#allocation4], 128, 128, 8
    $region13: #{dynamics_forward.1} parent=1 // pred_fallthru
      _
    // Predicated region
    $region14: #{dynamics_forward.1} parent=1 // pred_check
      _
    $region15: #{dynamics_forward.1} parent=1 // pred_check_branch
      %29 = sbr.rel (0) target = $region17
    $region16: #{dynamics_forward.1} parent=1 // pred_region
      _
    $region17: #{dynamics_forward.1} parent=1 // pred_fallthru
      _
    // Predicated region
    $region18: #{dynamics_forward.1} parent=1 // pred_check
      _
    $region19: #{dynamics_forward.1} parent=1 // pred_check_branch
      %31 = sbr.rel (0) target = $region21
    $region20: #{dynamics_forward.1} parent=1 // pred_region
      %32 = dma.done [#allocation4], 2048
    $region21: #{dynamics_forward.1} parent=1 // pred_fallthru
      _
    %v33 = vld [vmem:[%s1] sm:$0xff]
    %v34 = vld [vmem:[#allocation3] sm:$0xff]
    %v35 = vld [vmem:[#allocation3 + $0x8] sm:$0xff]
    %v36 = vld [vmem:[#allocation3 + $0x10] sm:$0xff]
    %v37 = vld [vmem:[#allocation3 + $0x18] sm:$0xff]
    %v38 = vld [vmem:[#allocation3 + $0x20] sm:$0xff]
    %v39 = vld [vmem:[#allocation3 + $0x28] sm:$0xff]
    %v40 = vld [vmem:[#allocation3 + $0x30] sm:$0xff]
    %v41 = vld [vmem:[#allocation3 + $0x38] sm:$0xff]
    %v42 = vld [vmem:[#allocation3 + $0x40] sm:$0xff]
    %v43 = vld [vmem:[#allocation3 + $0x48] sm:$0xff]
    %v44 = vld [vmem:[#allocation3 + $0x50] sm:$0xff]
    %v45 = vld [vmem:[#allocation3 + $0x58] sm:$0xff]
    %v46 = vld [vmem:[#allocation3 + $0x60] sm:$0xff]
    %v47 = vld [vmem:[#allocation3 + $0x68] sm:$0xff]
    %v48 = vld [vmem:[#allocation3 + $0x70] sm:$0xff]
    %v49 = vld [vmem:[#allocation3 + $0x78] sm:$0xff]
    %v50 = vld [vmem:[%s3] sm:$0x1]
    %v52 = vlaneseq
    %v53 = vshrl.u32 %v52, 7
    %v54 = vsub.s32 0, %v53
    %v55 = vrot.slane %v50, %v54
    %57 = vmatprep.subr.mxu0 0.0
    %58 = vmatpush1.msra.mxu0 %v49
    %59 = vmatprep.subr.mxu0 0.0
    %60 = vmatpush1.msra.mxu0 %v48
    %61 = vmatprep.subr.mxu0 0.0
    %62 = vmatpush1.msra.mxu0 %v47
    %63 = vmatprep.subr.mxu0 0.0
    %64 = vmatpush1.msra.mxu0 %v46
    %65 = vmatprep.subr.mxu0 0.0
    %66 = vmatpush1.msra.mxu0 %v45
    %67 = vmatprep.subr.mxu0 0.0
    %68 = vmatpush1.msra.mxu0 %v44
    %69 = vmatprep.subr.mxu0 0.0
    %70 = vmatpush1.msra.mxu0 %v43
    %71 = vmatprep.subr.mxu0 0.0
    %72 = vmatpush1.msra.mxu0 %v42
    %73 = vmatprep.subr.mxu0 0.0
    %74 = vmatpush1.msra.mxu0 %v41
    %75 = vmatprep.subr.mxu0 0.0
    %76 = vmatpush1.msra.mxu0 %v40
    %77 = vmatprep.subr.mxu0 0.0
    %78 = vmatpush1.msra.mxu0 %v39
    %79 = vmatprep.subr.mxu0 0.0
    %80 = vmatpush1.msra.mxu0 %v38
    %81 = vmatprep.subr.mxu0 0.0
    %82 = vmatpush1.msra.mxu0 %v37
    %83 = vmatprep.subr.mxu0 0.0
    %84 = vmatpush1.msra.mxu0 %v36
    %85 = vmatprep.subr.mxu0 0.0
    %86 = vmatpush1.msra.mxu0 %v35
    %87 = vmatprep.subr.mxu0 0.0
    %88 = vmatpush1.msra.mxu0 %v34
    %89 = vmatprep.subr.mxu0 0.0
    %90 = vmatpush2.msra.mxu0 0.0
    %91 = vmatprep.subr.mxu0 0.0
    %92 = vmatpush2.msra.mxu0 0.0
    %93 = vmatprep.subr.mxu0 0.0
    %94 = vmatpush2.msra.mxu0 0.0
    %95 = vmatprep.subr.mxu0 0.0
    %96 = vmatpush2.msra.mxu0 0.0
    %97 = vmatprep.subr.mxu0 0.0
    %98 = vmatpush2.msra.mxu0 0.0
    %99 = vmatprep.subr.mxu0 0.0
    %100 = vmatpush2.msra.mxu0 0.0
    %101 = vmatprep.subr.mxu0 0.0
    %102 = vmatpush2.msra.mxu0 0.0
    %103 = vmatprep.subr.mxu0 0.0
    %104 = vmatpush2.msra.mxu0 0.0
    %105 = vmatprep.subr.mxu0 0.0
    %106 = vmatpush2.msra.mxu0 0.0
    %107 = vmatprep.subr.mxu0 0.0
    %108 = vmatpush2.msra.mxu0 0.0
    %109 = vmatprep.subr.mxu0 0.0
    %110 = vmatpush2.msra.mxu0 0.0
    %111 = vmatprep.subr.mxu0 0.0
    %112 = vmatpush2.msra.mxu0 0.0
    %113 = vmatprep.subr.mxu0 0.0
    %114 = vmatpush2.msra.mxu0 0.0
    %115 = vmatprep.subr.mxu0 0.0
    %116 = vmatpush2.msra.mxu0 0.0
    %117 = vmatprep.subr.mxu0 0.0
    %118 = vmatpush2.msra.mxu0 0.0
    %119 = vmatprep.subr.mxu0 0.0
    %120 = vmatpush2.msra.mxu0 0.0
    %121 = vmatprep.mubr.f32.mxu0 0.0
    %122 = vmatmul.mubr.f32.gmra.mxu0 %v33
    %v123 = vpop.f32.mrf.mxu0
    %v124 = vadd.f32 %v55, %v123
    %v125 = vpop.f32.mrf.mxu0
    %126 = vdwg.mxu0
    %v127 = vtanh.pop %v124
    %s128 = sld [smem:[#allocation2]]
    %v129 = vstv %s128
    %v130 = vmul.f32 %v127, %v129
    %131 = vst [vmem:[#allocation6] sm:$0xff] %v130
    // Predicated region
    $region22: #{dynamics_forward.1} parent=1 // pred_check
      _
    $region23: #{dynamics_forward.1} parent=1 // pred_check_branch
      %133 = sbr.rel (0) target = $region25
    $region24: #{dynamics_forward.1} parent=1 // pred_region
      %s135 = ssub.s32 128, 128
      %136 = vsyncadd [#allocation5], %s135
      %s138 = sshll.u32 [#allocation6], 4
      %s139 = int_to_ptr.vmem [resolvable:$true] %s138
      %141 = dma.vmem_to_hbm [thread:$0]  %s139, 128, %s4, [#allocation5]
    $region25: #{dynamics_forward.1} parent=1 // pred_fallthru
      _
    // Predicated region
    $region26: #{dynamics_forward.1} parent=1 // pred_check
      _
    $region27: #{dynamics_forward.1} parent=1 // pred_check_branch
      %143 = sbr.rel (0) target = $region29
    $region28: #{dynamics_forward.1} parent=1 // pred_region
      %144 = dma.done [#allocation5], 128
    $region29: #{dynamics_forward.1} parent=1 // pred_fallthru
      _
    %145 = vsyncpa [#allocation4], 1
    %146 = vsyncpa [#allocation5], 1

</llo_original>
